<compile_context>
chip_gen: v6e
topology: v6e:2x2x1
jax: 0.10.0
libtpu: 0.0.40
codegen_flags: <defaults>
</compile_context>

<pallas_src>
import math

import jax
import jax.numpy as jnp
from jax.experimental import pallas as pl
from jax.experimental.pallas import tpu as pltpu

_SUBLANE = 8                      # f32 sublane granularity
_LANE = 128                       # TPU lane width
_MAX_TILE_ELEMS = 64 * 1024       # batch elems per component per grid step
                                  # -> (12+4+12)*64K*4B ~= 7.3 MiB/step
_TARGET_STEPS = 4                 # >=4 grid steps so prefetch/writeback hide
_VMEM_LIMIT = 40 * 1024 * 1024    # 14.7 MiB dbl-buffered I/O + spill scratch
                                  # + headroom; safe under v7x's 64 MiB VMEM


def _round_up(x: int, m: int) -> int:
    return ((x + m - 1) // m) * m


def _choose_layout(B: int):
    """Pick (padded_B, lane_width) so the SoA batch maps onto (rows, lanes).

    Prefer the widest lane dim (up to 1024) that divides B while leaving
    >=32 sublane rows (dense vregs + enough rows to tile).  Any multiple of
    128 runs with ZERO padding; only 128-unaligned B pays a pad copy.
    """
    for lw in (1024, 512, 256, 128):
        if B % lw == 0 and B // lw >= 32:
            return B, lw
    if B % _LANE == 0:
        return B, _LANE
    # TODO(synk): 128-unaligned B still costs one pad pass (+ output slice);
    # a (12,B) SoA buffer cannot be re-viewed as (rows,128) unless 128 | B.
    return _round_up(B, _LANE), _LANE


def _tile_rows(R: int, lw: int) -> int:
    """Rows per grid step: VMEM-capped, >=4 steps when possible, even-ish."""
    max_rows = max(_MAX_TILE_ELEMS // lw, _SUBLANE)   # always a multiple of 8
    if R <= _SUBLANE:
        return R                                      # single full-dim block
    target = min(max(_TARGET_STEPS, pl.cdiv(R, max_rows)), pl.cdiv(R, _SUBLANE))
    sb = min(_round_up(pl.cdiv(R, target), _SUBLANE), max_rows)
    # Mild parity nudge: an even step count keeps both v7x TensorCores busy.
    n = pl.cdiv(R, sb)
    if n > 1 and n % 2 == 1 and sb > _SUBLANE and pl.cdiv(R, sb - _SUBLANE) % 2 == 0:
        sb -= _SUBLANE
    return sb


def _make_quad_kernel(dt: float):
    g = -9.81
    Ix, Iy, Iz = 0.5, 0.1, 0.3
    # K = 1 and m = 1 in the reference module -> folded away.
    inv_Ix, inv_Iy, inv_Iz = 1.0 / Ix, 1.0 / Iy, 1.0 / Iz
    c_qr = Iy - Iz
    c_pr = Iz - Ix
    c_pq = Ix - Iy
    clamp_ang = 0.4 * math.pi

    def kernel(state_ref, control_ref, out_ref):
        # state_ref: (12, sb, lw), control_ref: (4, sb, lw), out_ref: (12, sb, lw)
        # Every component below is a dense (sb, lw) slab (batch on sublane+lane).
        phi = state_ref[3]
        theta = state_ref[4]
        psi = state_ref[5]

        cphi = jnp.cos(phi)
        sphi = jnp.sin(phi)
        ctheta = jnp.cos(theta)
        stheta = jnp.sin(theta)
        cpsi = jnp.cos(psi)
        spsi = jnp.sin(psi)
        # One exact divide; tan(theta) and both '/cos(theta)' reuse it.
        # NOTE: like the reference, this blows up as |theta| -> pi/2 (inputs
        # are not clamped, only outputs are).
        inv_ctheta = 1.0 / ctheta
        ttheta = stheta * inv_ctheta

        # ---- translational block first (its temporaries die before the
        # ---- angular block starts -> fewer live (sb,lw) slabs / less spill)
        u1 = control_ref[0]
        x_ddot = -(sphi * spsi + cpsi * cphi * stheta) * u1
        y_ddot = -(cpsi * sphi - cphi * spsi * stheta) * u1
        z_ddot = g - cphi * ctheta * u1

        new_xdot = state_ref[6] + x_ddot * dt
        new_ydot = state_ref[7] + y_ddot * dt
        new_zdot = state_ref[8] + z_ddot * dt

        out_ref[0] = state_ref[0] + new_xdot * dt
        # NOTE: faithfully reproduces the original module (adds dt, not * dt)
        out_ref[1] = state_ref[1] + new_ydot + dt
        out_ref[2] = state_ref[2] + new_zdot + dt
        out_ref[6] = jnp.clip(new_xdot, -1000.0, 1000.0)
        out_ref[7] = jnp.clip(new_ydot, -1000.0, 1000.0)
        out_ref[8] = jnp.clip(new_zdot, -1000.0, 1000.0)

        # ---- angular block
        p = state_ref[9]
        q = state_ref[10]
        r = state_ref[11]
        p_dot = (c_qr * q * r + control_ref[1]) * inv_Ix
        q_dot = (c_pr * p * r + control_ref[2]) * inv_Iy
        r_dot = (c_pq * p * q + control_ref[3]) * inv_Iz

        new_p = p + p_dot * dt
        new_q = q + q_dot * dt
        new_r = r + r_dot * dt

        qs_rc = new_q * sphi + new_r * cphi
        psi_dot = qs_rc * inv_ctheta
        theta_dot = new_q * cphi - new_r * sphi
        phi_dot = new_p + qs_rc * ttheta

        out_ref[3] = jnp.clip(phi + phi_dot * dt, -clamp_ang, clamp_ang)
        out_ref[4] = jnp.clip(theta + theta_dot * dt, -clamp_ang, clamp_ang)
        out_ref[5] = psi + psi_dot * dt
        out_ref[9] = jnp.clip(new_p, -1000.0, 1000.0)
        out_ref[10] = jnp.clip(new_q, -1000.0, 1000.0)
        out_ref[11] = jnp.clip(new_r, -1000.0, 1000.0)

    return kernel


def quadrotor_12d_dynamics_soa(state_t: jax.Array, control_t: jax.Array,
                               dt: float) -> jax.Array:
    """Transpose-free SoA entry point: state (12, B), control (4, B) -> (12, B)."""
    assert state_t.shape[0] == 12 and control_t.shape[0] == 4
    assert state_t.shape[1] == control_t.shape[1]
    B = state_t.shape[1]

    Bp, lw = _choose_layout(B)
    if Bp != B:  # only when 128 does not divide B (pad is O(B) extra traffic)
        state_t = jnp.pad(state_t, ((0, 0), (0, Bp - B)))
        control_t = jnp.pad(control_t, ((0, 0), (0, Bp - B)))

    R = Bp // lw                     # sublane rows of batch
    sb = _tile_rows(R, lw)           # rows per grid step (multiple of 8, or R)
    n_tiles = pl.cdiv(R, sb)         # last block may be partial: OOB rows are
                                     # computed on garbage but never written.

    state_3d = state_t.reshape(12, R, lw)       # free row-major views
    control_3d = control_t.reshape(4, R, lw)

    out_3d = pl.pallas_call(
        _make_quad_kernel(float(dt)),
        out_shape=jax.ShapeDtypeStruct((12, R, lw), state_t.dtype),
        grid=(n_tiles,),
        in_specs=[
            pl.BlockSpec((12, sb, lw), lambda i: (0, i, 0)),
            pl.BlockSpec((4, sb, lw), lambda i: (0, i, 0)),
        ],
        out_specs=pl.BlockSpec((12, sb, lw), lambda i: (0, i, 0)),
        compiler_params=pltpu.CompilerParams(
            # TODO(synk): verify in the Mosaic dump that "parallel" shards the
            # batch grid across both v7x TensorCores; if not, switch to
            # pltpu.CORE_PARALLEL / pl.core_map.
            dimension_semantics=("parallel",),
            vmem_limit_bytes=_VMEM_LIMIT,
        ),
        cost_estimate=pl.CostEstimate(
            flops=60 * Bp, transcendentals=6 * Bp, bytes_accessed=112 * Bp),
    )(state_3d, control_3d)

    out = out_3d.reshape(12, Bp)
    return out if Bp == B else out[:, :B]


def quadrotor_12d_dynamics(state: jax.Array, control: jax.Array, dt: float) -> jax.Array:
    """Module-compatible interface: state (..., 12), control (..., 4) -> (..., 12).

    TODO(synk): the two XLA transposes below are ~2/3 of total HBM traffic for
    AoS callers; keep the surrounding pipeline in (12, B) SoA and call
    quadrotor_12d_dynamics_soa directly whenever possible.
    """
    assert state.shape[-1] == 12 and control.shape[-1] == 4
    assert state.shape[:-1] == control.shape[:-1]
    batch_shape = state.shape[:-1]
    B = math.prod(batch_shape) if batch_shape else 1

    state_t = state.reshape(B, 12).T      # (12, B)
    control_t = control.reshape(B, 4).T   # (4, B)
    out_t = quadrotor_12d_dynamics_soa(state_t, control_t, dt)
    return out_t.T.reshape(*batch_shape, 12)


def _reference(state, control, dt):
    """Pure-jnp reference mirroring the PyTorch module exactly."""
    g = -9.81
    m = 1.0
    Ix, Iy, Iz = 0.5, 0.1, 0.3
    K = 1.0
    comps = jnp.split(state, 12, axis=-1)
    x, y, z, phi, theta, psi, x_dot, y_dot, z_dot, p, q, r = comps
    u1, u2, u3, u4 = jnp.split(control, 4, axis=-1)
    cphi, ctheta, cpsi = jnp.cos(phi), jnp.cos(theta), jnp.cos(psi)
    sphi, stheta, spsi = jnp.sin(phi), jnp.sin(theta), jnp.sin(psi)
    ttheta = jnp.tan(theta)
    x_ddot = -(sphi * spsi + cpsi * cphi * stheta) * K * u1 / m
    y_ddot = -(cpsi * sphi - cphi * spsi * stheta) * K * u1 / m
    z_ddot = g - cphi * ctheta * K * u1 / m
    p_dot = ((Iy - Iz) * q * r + K * u2) / Ix
    q_dot = ((Iz - Ix) * p * r + K * u3) / Iy
    r_dot = ((Ix - Iy) * p * q + K * u4) / Iz
    new_xdot = x_dot + x_ddot * dt
    new_ydot = y_dot + y_ddot * dt
    new_zdot = z_dot + z_ddot * dt
    new_p = p + p_dot * dt
    new_q = q + q_dot * dt
    new_r = r + r_dot * dt
    psi_dot = new_q * sphi / ctheta + new_r * cphi / ctheta
    theta_dot = new_q * cphi - new_r * sphi
    phi_dot = new_p + new_q * sphi * ttheta + new_r * cphi * ttheta
    new_phi = phi + phi_dot * dt
    new_theta = theta + theta_dot * dt
    new_psi = psi + psi_dot * dt
    new_x = x + new_xdot * dt
    new_y = y + new_ydot + dt
    new_z = z + new_zdot + dt
    ca = 0.4 * math.pi
    new_phi = jnp.clip(new_phi, -ca, ca)
    new_theta = jnp.clip(new_theta, -ca, ca)
    new_xdot = jnp.clip(new_xdot, -1000.0, 1000.0)
    new_ydot = jnp.clip(new_ydot, -1000.0, 1000.0)
    new_zdot = jnp.clip(new_zdot, -1000.0, 1000.0)
    new_p = jnp.clip(new_p, -1000.0, 1000.0)
    new_q = jnp.clip(new_q, -1000.0, 1000.0)
    new_r = jnp.clip(new_r, -1000.0, 1000.0)
    return jnp.concatenate(
        (new_x, new_y, new_z, new_phi, new_theta, new_psi,
         new_xdot, new_ydot, new_zdot, new_p, new_q, new_r), axis=-1)


if __name__ == "__main__":
    dt = 0.05
    key = jax.random.PRNGKey(0)
    k1, k2, k3, k4 = jax.random.split(key, 4)

    # 1) Module-compatible (B, 12) interface at a small batch.
    B = 16
    state = jax.random.normal(k1, (B, 12), dtype=jnp.float32) * 0.3
    control = jax.random.normal(k2, (B, 4), dtype=jnp.float32)
    ref = _reference(state, control, dt)
    out = jax.block_until_ready(quadrotor_12d_dynamics(state, control, dt))
    assert out.shape == (B, 12)
    assert jnp.allclose(out, ref, atol=1e-5, rtol=1e-5), "mismatch vs reference (AoS path)"

    # 2) Transpose-free SoA path with a 128-aligned but tile-unaligned batch:
    #    zero padding, 2 grid steps, partial last block (masked writeback).
    B2 = 9 * 128
    state2 = jax.random.normal(k3, (12, B2), dtype=jnp.float32) * 0.3
    control2 = jax.random.normal(k4, (4, B2), dtype=jnp.float32)
    ref2 = _reference(state2.T, control2.T, dt)
    out2 = jax.block_until_ready(quadrotor_12d_dynamics_soa(state2, control2, dt))
    assert out2.shape == (12, B2)
    assert jnp.allclose(out2.T, ref2, atol=1e-5, rtol=1e-5), "mismatch vs reference (SoA path)"

    print("KERNEL_OK")
</pallas_src>

<mosaic_0001>
module attributes {stable_mosaic.version = 11 : i64} {
  func.func @kernel(%arg0: i32, %arg1: memref<12x1x128xf32, #tpu.memory_space<vmem>>, %arg2: memref<4x1x128xf32, #tpu.memory_space<vmem>>, %arg3: memref<12x1x128xf32, #tpu.memory_space<vmem>>) attributes {dimension_semantics = [#tpu.dimension_semantics<parallel>], iteration_bounds = array<i64: 1>, scalar_prefetch = 0 : i64, scratch_operands = 0 : i64, tpu.core_type = #tpu.core_type<tc>, window_params = [{transform_indices = @transform_0, window_bounds = array<i64: 12, 1, 128>}, {transform_indices = @transform_1, window_bounds = array<i64: 4, 1, 128>}, {transform_indices = @transform_2, window_bounds = array<i64: 12, 1, 128>}]} {
    %c3 = arith.constant 3 : index
    %c0 = arith.constant 0 : index
    %c0_0 = arith.constant 0 : index
    %0 = vector.load %arg1[%c3, %c0, %c0_0] : memref<12x1x128xf32, #tpu.memory_space<vmem>>, vector<1x1x128xf32>
    %1 = vector.shape_cast %0 : vector<1x1x128xf32> to vector<1x128xf32>
    %c4 = arith.constant 4 : index
    %c0_1 = arith.constant 0 : index
    %c0_2 = arith.constant 0 : index
    %2 = vector.load %arg1[%c4, %c0_1, %c0_2] : memref<12x1x128xf32, #tpu.memory_space<vmem>>, vector<1x1x128xf32>
    %3 = vector.shape_cast %2 : vector<1x1x128xf32> to vector<1x128xf32>
    %c5 = arith.constant 5 : index
    %c0_3 = arith.constant 0 : index
    %c0_4 = arith.constant 0 : index
    %4 = vector.load %arg1[%c5, %c0_3, %c0_4] : memref<12x1x128xf32, #tpu.memory_space<vmem>>, vector<1x1x128xf32>
    %5 = vector.shape_cast %4 : vector<1x1x128xf32> to vector<1x128xf32>
    %6 = math.cos %1 : vector<1x128xf32>
    %7 = math.sin %1 : vector<1x128xf32>
    %8 = math.cos %3 : vector<1x128xf32>
    %9 = math.sin %3 : vector<1x128xf32>
    %10 = math.cos %5 : vector<1x128xf32>
    %11 = math.sin %5 : vector<1x128xf32>
    %cst = arith.constant 1.000000e+00 : f32
    %12 = vector.broadcast %cst : f32 to vector<1x128xf32>
    %13 = arith.divf %12, %8 : vector<1x128xf32>
    %14 = arith.mulf %9, %13 : vector<1x128xf32>
    %c0_5 = arith.constant 0 : index
    %c0_6 = arith.constant 0 : index
    %c0_7 = arith.constant 0 : index
    %15 = vector.load %arg2[%c0_5, %c0_6, %c0_7] : memref<4x1x128xf32, #tpu.memory_space<vmem>>, vector<1x1x128xf32>
    %16 = vector.shape_cast %15 : vector<1x1x128xf32> to vector<1x128xf32>
    %17 = arith.mulf %7, %11 : vector<1x128xf32>
    %18 = arith.mulf %10, %6 : vector<1x128xf32>
    %19 = arith.mulf %18, %9 : vector<1x128xf32>
    %20 = arith.addf %17, %19 : vector<1x128xf32>
    %cst_8 = arith.constant 0.000000e+00 : f32
    %21 = vector.broadcast %cst_8 : f32 to vector<1x128xf32>
    %22 = arith.subf %21, %20 : vector<1x128xf32>
    %23 = arith.mulf %22, %16 : vector<1x128xf32>
    %24 = arith.mulf %10, %7 : vector<1x128xf32>
    %25 = arith.mulf %6, %11 : vector<1x128xf32>
    %26 = arith.mulf %25, %9 : vector<1x128xf32>
    %27 = arith.subf %24, %26 : vector<1x128xf32>
    %cst_9 = arith.constant 0.000000e+00 : f32
    %28 = vector.broadcast %cst_9 : f32 to vector<1x128xf32>
    %29 = arith.subf %28, %27 : vector<1x128xf32>
    %30 = arith.mulf %29, %16 : vector<1x128xf32>
    %31 = arith.mulf %6, %8 : vector<1x128xf32>
    %32 = arith.mulf %31, %16 : vector<1x128xf32>
    %cst_10 = arith.constant -9.810000e+00 : f32
    %33 = vector.broadcast %cst_10 : f32 to vector<1x128xf32>
    %34 = arith.subf %33, %32 : vector<1x128xf32>
    %c6 = arith.constant 6 : index
    %c0_11 = arith.constant 0 : index
    %c0_12 = arith.constant 0 : index
    %35 = vector.load %arg1[%c6, %c0_11, %c0_12] : memref<12x1x128xf32, #tpu.memory_space<vmem>>, vector<1x1x128xf32>
    %36 = vector.shape_cast %35 : vector<1x1x128xf32> to vector<1x128xf32>
    %cst_13 = arith.constant 5.000000e-02 : f32
    %37 = vector.broadcast %cst_13 : f32 to vector<1x128xf32>
    %38 = arith.mulf %23, %37 : vector<1x128xf32>
    %39 = arith.addf %36, %38 : vector<1x128xf32>
    %c7 = arith.constant 7 : index
    %c0_14 = arith.constant 0 : index
    %c0_15 = arith.constant 0 : index
    %40 = vector.load %arg1[%c7, %c0_14, %c0_15] : memref<12x1x128xf32, #tpu.memory_space<vmem>>, vector<1x1x128xf32>
    %41 = vector.shape_cast %40 : vector<1x1x128xf32> to vector<1x128xf32>
    %cst_16 = arith.constant 5.000000e-02 : f32
    %42 = vector.broadcast %cst_16 : f32 to vector<1x128xf32>
    %43 = arith.mulf %30, %42 : vector<1x128xf32>
    %44 = arith.addf %41, %43 : vector<1x128xf32>
    %c8 = arith.constant 8 : index
    %c0_17 = arith.constant 0 : index
    %c0_18 = arith.constant 0 : index
    %45 = vector.load %arg1[%c8, %c0_17, %c0_18] : memref<12x1x128xf32, #tpu.memory_space<vmem>>, vector<1x1x128xf32>
    %46 = vector.shape_cast %45 : vector<1x1x128xf32> to vector<1x128xf32>
    %cst_19 = arith.constant 5.000000e-02 : f32
    %47 = vector.broadcast %cst_19 : f32 to vector<1x128xf32>
    %48 = arith.mulf %34, %47 : vector<1x128xf32>
    %49 = arith.addf %46, %48 : vector<1x128xf32>
    %c0_20 = arith.constant 0 : index
    %c0_21 = arith.constant 0 : index
    %c0_22 = arith.constant 0 : index
    %50 = vector.load %arg1[%c0_20, %c0_21, %c0_22] : memref<12x1x128xf32, #tpu.memory_space<vmem>>, vector<1x1x128xf32>
    %51 = vector.shape_cast %50 : vector<1x1x128xf32> to vector<1x128xf32>
    %cst_23 = arith.constant 5.000000e-02 : f32
    %52 = vector.broadcast %cst_23 : f32 to vector<1x128xf32>
    %53 = arith.mulf %39, %52 : vector<1x128xf32>
    %54 = arith.addf %51, %53 : vector<1x128xf32>
    %c0_24 = arith.constant 0 : index
    %c0_25 = arith.constant 0 : index
    %c0_26 = arith.constant 0 : index
    %55 = vector.load %arg3[%c0_24, %c0_25, %c0_26] : memref<12x1x128xf32, #tpu.memory_space<vmem>>, vector<1x1x128xf32>
    %56 = vector.shape_cast %55 : vector<1x1x128xf32> to vector<1x128xf32>
    %57 = vector.shape_cast %54 : vector<1x128xf32> to vector<1x1x128xf32>
    tpu.vector_store %arg3[%c0_24, %c0_25, %c0_26], %57 {strides = array<i32>} : memref<12x1x128xf32, #tpu.memory_space<vmem>>, vector<1x1x128xf32>,
    %c1 = arith.constant 1 : index
    %c0_27 = arith.constant 0 : index
    %c0_28 = arith.constant 0 : index
    %58 = vector.load %arg1[%c1, %c0_27, %c0_28] : memref<12x1x128xf32, #tpu.memory_space<vmem>>, vector<1x1x128xf32>
    %59 = vector.shape_cast %58 : vector<1x1x128xf32> to vector<1x128xf32>
    %60 = arith.addf %59, %44 : vector<1x128xf32>
    %cst_29 = arith.constant 5.000000e-02 : f32
    %61 = vector.broadcast %cst_29 : f32 to vector<1x128xf32>
    %62 = arith.addf %60, %61 : vector<1x128xf32>
    %c1_30 = arith.constant 1 : index
    %c0_31 = arith.constant 0 : index
    %c0_32 = arith.constant 0 : index
    %63 = vector.load %arg3[%c1_30, %c0_31, %c0_32] : memref<12x1x128xf32, #tpu.memory_space<vmem>>, vector<1x1x128xf32>
    %64 = vector.shape_cast %63 : vector<1x1x128xf32> to vector<1x128xf32>
    %65 = vector.shape_cast %62 : vector<1x128xf32> to vector<1x1x128xf32>
    tpu.vector_store %arg3[%c1_30, %c0_31, %c0_32], %65 {strides = array<i32>} : memref<12x1x128xf32, #tpu.memory_space<vmem>>, vector<1x1x128xf32>,
    %c2 = arith.constant 2 : index
    %c0_33 = arith.constant 0 : index
    %c0_34 = arith.constant 0 : index
    %66 = vector.load %arg1[%c2, %c0_33, %c0_34] : memref<12x1x128xf32, #tpu.memory_space<vmem>>, vector<1x1x128xf32>
    %67 = vector.shape_cast %66 : vector<1x1x128xf32> to vector<1x128xf32>
    %68 = arith.addf %67, %49 : vector<1x128xf32>
    %cst_35 = arith.constant 5.000000e-02 : f32
    %69 = vector.broadcast %cst_35 : f32 to vector<1x128xf32>
    %70 = arith.addf %68, %69 : vector<1x128xf32>
    %c2_36 = arith.constant 2 : index
    %c0_37 = arith.constant 0 : index
    %c0_38 = arith.constant 0 : index
    %71 = vector.load %arg3[%c2_36, %c0_37, %c0_38] : memref<12x1x128xf32, #tpu.memory_space<vmem>>, vector<1x1x128xf32>
    %72 = vector.shape_cast %71 : vector<1x1x128xf32> to vector<1x128xf32>
    %73 = vector.shape_cast %70 : vector<1x128xf32> to vector<1x1x128xf32>
    tpu.vector_store %arg3[%c2_36, %c0_37, %c0_38], %73 {strides = array<i32>} : memref<12x1x128xf32, #tpu.memory_space<vmem>>, vector<1x1x128xf32>,
    %cst_39 = arith.constant -1.000000e+03 : f32
    %cst_40 = arith.constant 1.000000e+03 : f32
    %74 = vector.broadcast %cst_39 : f32 to vector<1x128xf32>
    %75 = arith.maximumf %74, %39 : vector<1x128xf32>
    %76 = vector.broadcast %cst_40 : f32 to vector<1x128xf32>
    %77 = arith.minimumf %76, %75 : vector<1x128xf32>
    %c6_41 = arith.constant 6 : index
    %c0_42 = arith.constant 0 : index
    %c0_43 = arith.constant 0 : index
    %78 = vector.load %arg3[%c6_41, %c0_42, %c0_43] : memref<12x1x128xf32, #tpu.memory_space<vmem>>, vector<1x1x128xf32>
    %79 = vector.shape_cast %78 : vector<1x1x128xf32> to vector<1x128xf32>
    %80 = vector.shape_cast %77 : vector<1x128xf32> to vector<1x1x128xf32>
    tpu.vector_store %arg3[%c6_41, %c0_42, %c0_43], %80 {strides = array<i32>} : memref<12x1x128xf32, #tpu.memory_space<vmem>>, vector<1x1x128xf32>,
    %cst_44 = arith.constant -1.000000e+03 : f32
    %cst_45 = arith.constant 1.000000e+03 : f32
    %81 = vector.broadcast %cst_44 : f32 to vector<1x128xf32>
    %82 = arith.maximumf %81, %44 : vector<1x128xf32>
    %83 = vector.broadcast %cst_45 : f32 to vector<1x128xf32>
    %84 = arith.minimumf %83, %82 : vector<1x128xf32>
    %c7_46 = arith.constant 7 : index
    %c0_47 = arith.constant 0 : index
    %c0_48 = arith.constant 0 : index
    %85 = vector.load %arg3[%c7_46, %c0_47, %c0_48] : memref<12x1x128xf32, #tpu.memory_space<vmem>>, vector<1x1x128xf32>
    %86 = vector.shape_cast %85 : vector<1x1x128xf32> to vector<1x128xf32>
    %87 = vector.shape_cast %84 : vector<1x128xf32> to vector<1x1x128xf32>
    tpu.vector_store %arg3[%c7_46, %c0_47, %c0_48], %87 {strides = array<i32>} : memref<12x1x128xf32, #tpu.memory_space<vmem>>, vector<1x1x128xf32>,
    %cst_49 = arith.constant -1.000000e+03 : f32
    %cst_50 = arith.constant 1.000000e+03 : f32
    %88 = vector.broadcast %cst_49 : f32 to vector<1x128xf32>
    %89 = arith.maximumf %88, %49 : vector<1x128xf32>
    %90 = vector.broadcast %cst_50 : f32 to vector<1x128xf32>
    %91 = arith.minimumf %90, %89 : vector<1x128xf32>
    %c8_51 = arith.constant 8 : index
    %c0_52 = arith.constant 0 : index
    %c0_53 = arith.constant 0 : index
    %92 = vector.load %arg3[%c8_51, %c0_52, %c0_53] : memref<12x1x128xf32, #tpu.memory_space<vmem>>, vector<1x1x128xf32>
    %93 = vector.shape_cast %92 : vector<1x1x128xf32> to vector<1x128xf32>
    %94 = vector.shape_cast %91 : vector<1x128xf32> to vector<1x1x128xf32>
    tpu.vector_store %arg3[%c8_51, %c0_52, %c0_53], %94 {strides = array<i32>} : memref<12x1x128xf32, #tpu.memory_space<vmem>>, vector<1x1x128xf32>,
    %c9 = arith.constant 9 : index
    %c0_54 = arith.constant 0 : index
    %c0_55 = arith.constant 0 : index
    %95 = vector.load %arg1[%c9, %c0_54, %c0_55] : memref<12x1x128xf32, #tpu.memory_space<vmem>>, vector<1x1x128xf32>
    %96 = vector.shape_cast %95 : vector<1x1x128xf32> to vector<1x128xf32>
    %c10 = arith.constant 10 : index
    %c0_56 = arith.constant 0 : index
    %c0_57 = arith.constant 0 : index
    %97 = vector.load %arg1[%c10, %c0_56, %c0_57] : memref<12x1x128xf32, #tpu.memory_space<vmem>>, vector<1x1x128xf32>
    %98 = vector.shape_cast %97 : vector<1x1x128xf32> to vector<1x128xf32>
    %c11 = arith.constant 11 : index
    %c0_58 = arith.constant 0 : index
    %c0_59 = arith.constant 0 : index
    %99 = vector.load %arg1[%c11, %c0_58, %c0_59] : memref<12x1x128xf32, #tpu.memory_space<vmem>>, vector<1x1x128xf32>
    %100 = vector.shape_cast %99 : vector<1x1x128xf32> to vector<1x128xf32>
    %cst_60 = arith.constant -2.000000e-01 : f32
    %101 = vector.broadcast %cst_60 : f32 to vector<1x128xf32>
    %102 = arith.mulf %101, %98 : vector<1x128xf32>
    %103 = arith.mulf %102, %100 : vector<1x128xf32>
    %c1_61 = arith.constant 1 : index
    %c0_62 = arith.constant 0 : index
    %c0_63 = arith.constant 0 : index
    %104 = vector.load %arg2[%c1_61, %c0_62, %c0_63] : memref<4x1x128xf32, #tpu.memory_space<vmem>>, vector<1x1x128xf32>
    %105 = vector.shape_cast %104 : vector<1x1x128xf32> to vector<1x128xf32>
    %106 = arith.addf %103, %105 : vector<1x128xf32>
    %cst_64 = arith.constant 2.000000e+00 : f32
    %107 = vector.broadcast %cst_64 : f32 to vector<1x128xf32>
    %108 = arith.mulf %106, %107 : vector<1x128xf32>
    %cst_65 = arith.constant -2.000000e-01 : f32
    %109 = vector.broadcast %cst_65 : f32 to vector<1x128xf32>
    %110 = arith.mulf %109, %96 : vector<1x128xf32>
    %111 = arith.mulf %110, %100 : vector<1x128xf32>
    %c2_66 = arith.constant 2 : index
    %c0_67 = arith.constant 0 : index
    %c0_68 = arith.constant 0 : index
    %112 = vector.load %arg2[%c2_66, %c0_67, %c0_68] : memref<4x1x128xf32, #tpu.memory_space<vmem>>, vector<1x1x128xf32>
    %113 = vector.shape_cast %112 : vector<1x1x128xf32> to vector<1x128xf32>
    %114 = arith.addf %111, %113 : vector<1x128xf32>
    %cst_69 = arith.constant 1.000000e+01 : f32
    %115 = vector.broadcast %cst_69 : f32 to vector<1x128xf32>
    %116 = arith.mulf %114, %115 : vector<1x128xf32>
    %cst_70 = arith.constant 4.000000e-01 : f32
    %117 = vector.broadcast %cst_70 : f32 to vector<1x128xf32>
    %118 = arith.mulf %117, %96 : vector<1x128xf32>
    %119 = arith.mulf %118, %98 : vector<1x128xf32>
    %c3_71 = arith.constant 3 : index
    %c0_72 = arith.constant 0 : index
    %c0_73 = arith.constant 0 : index
    %120 = vector.load %arg2[%c3_71, %c0_72, %c0_73] : memref<4x1x128xf32, #tpu.memory_space<vmem>>, vector<1x1x128xf32>
    %121 = vector.shape_cast %120 : vector<1x1x128xf32> to vector<1x128xf32>
    %122 = arith.addf %119, %121 : vector<1x128xf32>
    %cst_74 = arith.constant 3.33333325 : f32
    %123 = vector.broadcast %cst_74 : f32 to vector<1x128xf32>
    %124 = arith.mulf %122, %123 : vector<1x128xf32>
    %cst_75 = arith.constant 5.000000e-02 : f32
    %125 = vector.broadcast %cst_75 : f32 to vector<1x128xf32>
    %126 = arith.mulf %108, %125 : vector<1x128xf32>
    %127 = arith.addf %96, %126 : vector<1x128xf32>
    %cst_76 = arith.constant 5.000000e-02 : f32
    %128 = vector.broadcast %cst_76 : f32 to vector<1x128xf32>
    %129 = arith.mulf %116, %128 : vector<1x128xf32>
    %130 = arith.addf %98, %129 : vector<1x128xf32>
    %cst_77 = arith.constant 5.000000e-02 : f32
    %131 = vector.broadcast %cst_77 : f32 to vector<1x128xf32>
    %132 = arith.mulf %124, %131 : vector<1x128xf32>
    %133 = arith.addf %100, %132 : vector<1x128xf32>
    %134 = arith.mulf %130, %7 : vector<1x128xf32>
    %135 = arith.mulf %133, %6 : vector<1x128xf32>
    %136 = arith.addf %134, %135 : vector<1x128xf32>
    %137 = arith.mulf %136, %13 : vector<1x128xf32>
    %138 = arith.mulf %130, %6 : vector<1x128xf32>
    %139 = arith.mulf %133, %7 : vector<1x128xf32>
    %140 = arith.subf %138, %139 : vector<1x128xf32>
    %141 = arith.mulf %136, %14 : vector<1x128xf32>
    %142 = arith.addf %127, %141 : vector<1x128xf32>
    %cst_78 = arith.constant 5.000000e-02 : f32
    %143 = vector.broadcast %cst_78 : f32 to vector<1x128xf32>
    %144 = arith.mulf %142, %143 : vector<1x128xf32>
    %145 = arith.addf %1, %144 : vector<1x128xf32>
    %cst_79 = arith.constant -1.2566371 : f32
    %cst_80 = arith.constant 1.2566371 : f32
    %146 = vector.broadcast %cst_79 : f32 to vector<1x128xf32>
    %147 = arith.maximumf %146, %145 : vector<1x128xf32>
    %148 = vector.broadcast %cst_80 : f32 to vector<1x128xf32>
    %149 = arith.minimumf %148, %147 : vector<1x128xf32>
    %c3_81 = arith.constant 3 : index
    %c0_82 = arith.constant 0 : index
    %c0_83 = arith.constant 0 : index
    %150 = vector.load %arg3[%c3_81, %c0_82, %c0_83] : memref<12x1x128xf32, #tpu.memory_space<vmem>>, vector<1x1x128xf32>
    %151 = vector.shape_cast %150 : vector<1x1x128xf32> to vector<1x128xf32>
    %152 = vector.shape_cast %149 : vector<1x128xf32> to vector<1x1x128xf32>
    tpu.vector_store %arg3[%c3_81, %c0_82, %c0_83], %152 {strides = array<i32>} : memref<12x1x128xf32, #tpu.memory_space<vmem>>, vector<1x1x128xf32>,
    %cst_84 = arith.constant 5.000000e-02 : f32
    %153 = vector.broadcast %cst_84 : f32 to vector<1x128xf32>
    %154 = arith.mulf %140, %153 : vector<1x128xf32>
    %155 = arith.addf %3, %154 : vector<1x128xf32>
    %cst_85 = arith.constant -1.2566371 : f32
    %cst_86 = arith.constant 1.2566371 : f32
    %156 = vector.broadcast %cst_85 : f32 to vector<1x128xf32>
    %157 = arith.maximumf %156, %155 : vector<1x128xf32>
    %158 = vector.broadcast %cst_86 : f32 to vector<1x128xf32>
    %159 = arith.minimumf %158, %157 : vector<1x128xf32>
    %c4_87 = arith.constant 4 : index
    %c0_88 = arith.constant 0 : index
    %c0_89 = arith.constant 0 : index
    %160 = vector.load %arg3[%c4_87, %c0_88, %c0_89] : memref<12x1x128xf32, #tpu.memory_space<vmem>>, vector<1x1x128xf32>
    %161 = vector.shape_cast %160 : vector<1x1x128xf32> to vector<1x128xf32>
    %162 = vector.shape_cast %159 : vector<1x128xf32> to vector<1x1x128xf32>
    tpu.vector_store %arg3[%c4_87, %c0_88, %c0_89], %162 {strides = array<i32>} : memref<12x1x128xf32, #tpu.memory_space<vmem>>, vector<1x1x128xf32>,
    %cst_90 = arith.constant 5.000000e-02 : f32
    %163 = vector.broadcast %cst_90 : f32 to vector<1x128xf32>
    %164 = arith.mulf %137, %163 : vector<1x128xf32>
    %165 = arith.addf %5, %164 : vector<1x128xf32>
    %c5_91 = arith.constant 5 : index
    %c0_92 = arith.constant 0 : index
    %c0_93 = arith.constant 0 : index
    %166 = vector.load %arg3[%c5_91, %c0_92, %c0_93] : memref<12x1x128xf32, #tpu.memory_space<vmem>>, vector<1x1x128xf32>
    %167 = vector.shape_cast %166 : vector<1x1x128xf32> to vector<1x128xf32>
    %168 = vector.shape_cast %165 : vector<1x128xf32> to vector<1x1x128xf32>
    tpu.vector_store %arg3[%c5_91, %c0_92, %c0_93], %168 {strides = array<i32>} : memref<12x1x128xf32, #tpu.memory_space<vmem>>, vector<1x1x128xf32>,
    %cst_94 = arith.constant -1.000000e+03 : f32
    %cst_95 = arith.constant 1.000000e+03 : f32
    %169 = vector.broadcast %cst_94 : f32 to vector<1x128xf32>
    %170 = arith.maximumf %169, %127 : vector<1x128xf32>
    %171 = vector.broadcast %cst_95 : f32 to vector<1x128xf32>
    %172 = arith.minimumf %171, %170 : vector<1x128xf32>
    %c9_96 = arith.constant 9 : index
    %c0_97 = arith.constant 0 : index
    %c0_98 = arith.constant 0 : index
    %173 = vector.load %arg3[%c9_96, %c0_97, %c0_98] : memref<12x1x128xf32, #tpu.memory_space<vmem>>, vector<1x1x128xf32>
    %174 = vector.shape_cast %173 : vector<1x1x128xf32> to vector<1x128xf32>
    %175 = vector.shape_cast %172 : vector<1x128xf32> to vector<1x1x128xf32>
    tpu.vector_store %arg3[%c9_96, %c0_97, %c0_98], %175 {strides = array<i32>} : memref<12x1x128xf32, #tpu.memory_space<vmem>>, vector<1x1x128xf32>,
    %cst_99 = arith.constant -1.000000e+03 : f32
    %cst_100 = arith.constant 1.000000e+03 : f32
    %176 = vector.broadcast %cst_99 : f32 to vector<1x128xf32>
    %177 = arith.maximumf %176, %130 : vector<1x128xf32>
    %178 = vector.broadcast %cst_100 : f32 to vector<1x128xf32>
    %179 = arith.minimumf %178, %177 : vector<1x128xf32>
    %c10_101 = arith.constant 10 : index
    %c0_102 = arith.constant 0 : index
    %c0_103 = arith.constant 0 : index
    %180 = vector.load %arg3[%c10_101, %c0_102, %c0_103] : memref<12x1x128xf32, #tpu.memory_space<vmem>>, vector<1x1x128xf32>
    %181 = vector.shape_cast %180 : vector<1x1x128xf32> to vector<1x128xf32>
    %182 = vector.shape_cast %179 : vector<1x128xf32> to vector<1x1x128xf32>
    tpu.vector_store %arg3[%c10_101, %c0_102, %c0_103], %182 {strides = array<i32>} : memref<12x1x128xf32, #tpu.memory_space<vmem>>, vector<1x1x128xf32>,
    %cst_104 = arith.constant -1.000000e+03 : f32
    %cst_105 = arith.constant 1.000000e+03 : f32
    %183 = vector.broadcast %cst_104 : f32 to vector<1x128xf32>
    %184 = arith.maximumf %183, %133 : vector<1x128xf32>
    %185 = vector.broadcast %cst_105 : f32 to vector<1x128xf32>
    %186 = arith.minimumf %185, %184 : vector<1x128xf32>
    %c11_106 = arith.constant 11 : index
    %c0_107 = arith.constant 0 : index
    %c0_108 = arith.constant 0 : index
    %187 = vector.load %arg3[%c11_106, %c0_107, %c0_108] : memref<12x1x128xf32, #tpu.memory_space<vmem>>, vector<1x1x128xf32>
    %188 = vector.shape_cast %187 : vector<1x1x128xf32> to vector<1x128xf32>
    %189 = vector.shape_cast %186 : vector<1x128xf32> to vector<1x1x128xf32>
    tpu.vector_store %arg3[%c11_106, %c0_107, %c0_108], %189 {strides = array<i32>} : memref<12x1x128xf32, #tpu.memory_space<vmem>>, vector<1x1x128xf32>,
    return
  }
  func.func @transform_0(%arg0: i32) -> (i32, i32, i32) {
    %c0_i32 = arith.constant 0 : i32
    %c0_i32_0 = arith.constant 0 : i32
    %c0_i32_1 = arith.constant 0 : i32
    return %c0_i32, %arg0, %c0_i32_0 : i32, i32, i32
  }
  func.func @transform_1(%arg0: i32) -> (i32, i32, i32) {
    %c0_i32 = arith.constant 0 : i32
    %c0_i32_0 = arith.constant 0 : i32
    %c0_i32_1 = arith.constant 0 : i32
    return %c0_i32, %arg0, %c0_i32_0 : i32, i32, i32
  }
  func.func @transform_2(%arg0: i32) -> (i32, i32, i32) {
    %c0_i32 = arith.constant 0 : i32
    %c0_i32_0 = arith.constant 0 : i32
    %c0_i32_1 = arith.constant 0 : i32
    return %c0_i32, %arg0, %c0_i32_0 : i32, i32, i32
  }
}

</mosaic_0001>

<llo_original>
// kernel: tpu_custom_call.1
$region0: #{tpu_custom_call.1}
  #allocation0 [shape = 'u32[]', space=smem, size = 0x4, offset = 0x4, fixed_abs, tag = 'smem constant byte address 0x4 - core index']
  #allocation1 [shape = 'u32[144,128]{1,0:T(1,128)}', space=vmem, size = 0x12000, scoped, tag = 'internal scratch']
  %s0 = inlined_call_operand.hbm [shape: f32[12,1,128], index: 0, kind: input, shape index: {}]
  %s1 = inlined_call_operand.hbm [shape: f32[4,1,128], index: 1, kind: input, shape index: {}]
  %s2 = inlined_call_operand.hbm [shape: f32[12,1,128], index: 2, kind: output, shape index: {}]
  %s3 = sld [smem:[#allocation0]]
  $region26: #{tpu_custom_call.1} parent=0
    _
  %s5 = ssub.s32 1, %s3
  %s6 = scalar_select 0, %s5, %s3
  $region1: #{tpu_custom_call.1} parent=0
    #allocation2 [shape = 'u8[6144]{0}', space=vmem, size = 0x1800, scoped, tag = 'input window, operand 0, single buffered']
    #allocation3 [shape = 's32[1]{0}', space=sflag, size = 0x4, scoped, tag = 'scoped memory for tpu_custom_call.1']
    #allocation4 [shape = 's32[1]{0}', space=sflag, size = 0x4, scoped, tag = 'scoped memory for tpu_custom_call.1']
    #allocation5 [shape = 'u8[2048]{0}', space=vmem, size = 0x800, scoped, tag = 'input window, operand 1, single buffered']
    #allocation6 [shape = 's32[1]{0}', space=sflag, size = 0x4, scoped, tag = 'scoped memory for tpu_custom_call.1']
    #allocation7 [shape = 'u8[6144]{0}', space=vmem, size = 0x1800, scoped, tag = 'output window, operand 0, single buffered']
    %7 = vsyncpa [#allocation3], 0
    %8 = vsyncpa [#allocation6], 0
    %9 = vsyncpa [#allocation4], 0
    // Predicated region
    $region2: #{tpu_custom_call.1} parent=1 // pred_check
      _
    $region3: #{tpu_custom_call.1} parent=1 // pred_check_branch
      %11 = sbr.rel (0) target = $region5
    $region4: #{tpu_custom_call.1} parent=1 // pred_region
      %s13 = ssub.s32 192, 192
      %14 = vsyncadd [#allocation3], %s13
      %s15 = sshll.u32 [#allocation2], 4
      %s16 = int_to_ptr.vmem [resolvable:$true] %s15
      %21 = dma.hbm_to_vmem [thread:$0]  %s0, 192, %s16, [#allocation3], 16, 16, 1
    $region5: #{tpu_custom_call.1} parent=1 // pred_fallthru
      _
    // Predicated region
    $region6: #{tpu_custom_call.1} parent=1 // pred_check
      _
    $region7: #{tpu_custom_call.1} parent=1 // pred_check_branch
      %23 = sbr.rel (0) target = $region9
    $region8: #{tpu_custom_call.1} parent=1 // pred_region
      %s25 = ssub.s32 64, 64
      %26 = vsyncadd [#allocation6], %s25
      %s27 = sshll.u32 [#allocation5], 4
      %s28 = int_to_ptr.vmem [resolvable:$true] %s27
      %33 = dma.hbm_to_vmem [thread:$0]  %s1, 64, %s28, [#allocation6], 16, 16, 1
    $region9: #{tpu_custom_call.1} parent=1 // pred_fallthru
      _
    // Predicated region
    $region10: #{tpu_custom_call.1} parent=1 // pred_check
      _
    $region11: #{tpu_custom_call.1} parent=1 // pred_check_branch
      %35 = sbr.rel (0) target = $region13
    $region12: #{tpu_custom_call.1} parent=1 // pred_region
      %36 = dma.done [#allocation3], 192
    $region13: #{tpu_custom_call.1} parent=1 // pred_fallthru
      _
    // Predicated region
    $region14: #{tpu_custom_call.1} parent=1 // pred_check
      _
    $region15: #{tpu_custom_call.1} parent=1 // pred_check_branch
      %38 = sbr.rel (0) target = $region17
    $region16: #{tpu_custom_call.1} parent=1 // pred_region
      %39 = dma.done [#allocation6], 64
    $region17: #{tpu_custom_call.1} parent=1 // pred_fallthru
      _
    %s40 = scalar_lea.vmem [#allocation2], 3
    %v41 = vld [vmem:[%s40] sm:$0x1]
    %s42 = scalar_lea.vmem [#allocation2], 4
    %v43 = vld [vmem:[%s42] sm:$0x1]
    %s44 = scalar_lea.vmem [#allocation2], 5
    %v45 = vld [vmem:[%s44] sm:$0x1]
    %v46 = vand.u32 2147483647, %v41
    %vm47 = vcmp.le.f32.partialorder %v46, 0.7853982
    %vm48 = vcmp.lt.s32.totalorder %v41, 0
    %v49 = vand.u32 %v41, 2139095040
    %v50 = vshrl.u32 %v49, 23
    %v51 = vsub.s32 %v50, 127
    %v52 = vand.u32 2147483647, %v41
    %v53 = vand.u32 %v52, 8388607
    %v54 = vor.u32 %v53, 8388608
    %v55 = vsub.s32 0, %v54
    %v56 = vadd.s32 %v51, 1
    %vm57 = vcmp.gt.s32.totalorder %v56, 0
    %v58 = vsel %vm57, %v56, 0
    %v59 = vshrl.u32 %v58, 5
    %v60 = vand.u32 %v58, 31
    %v61 = vsub.s32 32, %v60
    %v62 = vshrl.u32 683565275, %v61
    %v63 = vshll.u32 683565275, %v60
    %v64 = vshrl.u32 2475754826, %v61
    %v65 = vor.u32 %v63, %v64
    %v66 = vshll.u32 2475754826, %v60
    %v67 = vshrl.u32 2131351028, %v61
    %v68 = vor.u32 %v66, %v67
    %v69 = vshll.u32 2131351028, %v60
    %v70 = vshrl.u32 2102212464, %v61
    %v71 = vor.u32 %v69, %v70
    %v72 = vshll.u32 2102212464, %v60
    %v73 = vshrl.u32 920167782, %v61
    %v74 = vor.u32 %v72, %v73
    %v75 = vshll.u32 920167782, %v60
    %v76 = vshrl.u32 1326507024, %v61
    %v77 = vor.u32 %v75, %v76
    %vm78 = vcmp.lt.s32.totalorder %v59, 1
    %vm79 = vcmp.lt.s32.totalorder %v59, 2
    %vm80 = vcmp.lt.s32.totalorder %v59, 3
    %vm81 = vcmp.lt.s32.totalorder %v59, 4
    %v82 = vsel %vm78, %v62, %v65
    %v83 = vsel %vm81, %v71, 2102212464
    %v84 = vsel %vm80, %v68, %v83
    %v85 = vsel %vm79, %v82, %v84
    %v86 = vsel %vm78, %v65, %v68
    %v87 = vsel %vm81, %v74, 920167782
    %v88 = vsel %vm80, %v71, %v87
    %v89 = vsel %vm79, %v86, %v88
    %v90 = vsel %vm78, %v68, %v71
    %v91 = vsel %vm81, %v77, 1326507024
    %v92 = vsel %vm80, %v74, %v91
    %v93 = vsel %vm79, %v90, %v92
    %v94 = vshll.u32 %v54, 8
    %v95 = vmul.u32.u64.compose %v94, %v93
    %v96 = vextract.low.u32 %v95
    %v97 = vextract.high.u32 %v95
    %v98 = vmul.u32.u64.compose %v94, %v89
    %v99 = vextract.low.u32 %v98
    %v100 = vextract.high.u32 %v98
    %v101 = vmul.u32 %v94, %v85
    %v102 = vadd.s32 %v97, %v99
    %vm103 = vc.u32 %v97, %v99
    %v104 = vadd.s32 %v100, 1
    %v105 = vsel %vm103, %v104, %v100
    %v106 = vadd.s32 %v101, %v105
    %v107 = vadd.s32 %v106, 536870912
    %v108 = vshrl.u32 %v107, 30
    %v109 = vshll.u32 %v108, 30
    %v110 = vsub.s32 %v106, %v109
    %vm111 = vcmp.lt.s32.totalorder %v110, 0
    %v112 = vsub.s32 0, %v110
    %v113 = vsel %vm111, %v112, %v110
    %v114 = vclz %v113
    %v115 = vsub.s32 %v114, 2
    %vm116 = vcmp.gt.s32.totalorder 0, %v115
    %v117 = vsel %vm116, 0, %v115
    %v118 = vsub.s32 32, %v117
    %v119 = vshll.u32 %v110, %v117
    %v120 = vshrl.u32 %v102, %v118
    %v121 = vor.u32 %v119, %v120
    %v122 = vsub.s32 4294967266, %v117
    %v123 = vadd.s32 %v122, 127
    %v124 = vshll.u32 %v123, 23
    %v125 = vor.u32 4788187, %v124
    %v126 = vand.u32 2147483647, %v125
    %v128 = vcvt.s32.f32 %v121
    %v129 = vmul.f32 %v128, %v126
    %v130 = vxor.u32 %v129, 2147483648
    %v131 = vsel %vm48, %v130, %v129
    %v132 = vsub.s32 4, %v108
    %v133 = vsel %vm48, %v132, %v108
    %v134 = vsel %vm47, %v41, %v131
    %v135 = vsel %vm47, 0, %v133
    %v136 = vcosq.f32.pop %v134
    %v137 = vsinq.f32.pop %v134
    %vm138 = vweird.f32 %v41
    %v139 = vand.u32 %v135, 3
    %vm140 = vcmp.lt.s32.totalorder %v139, 2
    %vm141 = vcmp.eq.s32.totalorder %v139, 0
    %v142 = vxor.u32 %v137, 2147483648
    %v143 = vsel %vm141, %v136, %v142
    %vm144 = vcmp.eq.s32.totalorder %v139, 2
    %v145 = vxor.u32 %v136, 2147483648
    %v146 = vsel %vm144, %v145, %v137
    %v147 = vsel %vm140, %v143, %v146
    %v148 = vsel %vm138, nan, %v147
    %v149 = vand.u32 2147483647, %v41
    %vm150 = vcmp.le.f32.partialorder %v149, 0.7853982
    %vm151 = vcmp.lt.s32.totalorder %v41, 0
    %v152 = vand.u32 %v41, 2139095040
    %v153 = vshrl.u32 %v152, 23
    %v154 = vsub.s32 %v153, 127
    %v155 = vand.u32 2147483647, %v41
    %v156 = vand.u32 %v155, 8388607
    %v157 = vor.u32 %v156, 8388608
    %v158 = vsub.s32 0, %v157
    %v159 = vadd.s32 %v154, 1
    %vm160 = vcmp.gt.s32.totalorder %v159, 0
    %v161 = vsel %vm160, %v159, 0
    %v162 = vshrl.u32 %v161, 5
    %v163 = vand.u32 %v161, 31
    %v164 = vsub.s32 32, %v163
    %v165 = vshrl.u32 683565275, %v164
    %v166 = vshll.u32 683565275, %v163
    %v167 = vshrl.u32 2475754826, %v164
    %v168 = vor.u32 %v166, %v167
    %v169 = vshll.u32 2475754826, %v163
    %v170 = vshrl.u32 2131351028, %v164
    %v171 = vor.u32 %v169, %v170
    %v172 = vshll.u32 2131351028, %v163
    %v173 = vshrl.u32 2102212464, %v164
    %v174 = vor.u32 %v172, %v173
    %v175 = vshll.u32 2102212464, %v163
    %v176 = vshrl.u32 920167782, %v164
    %v177 = vor.u32 %v175, %v176
    %v178 = vshll.u32 920167782, %v163
    %v179 = vshrl.u32 1326507024, %v164
    %v180 = vor.u32 %v178, %v179
    %vm181 = vcmp.lt.s32.totalorder %v162, 1
    %vm182 = vcmp.lt.s32.totalorder %v162, 2
    %vm183 = vcmp.lt.s32.totalorder %v162, 3
    %vm184 = vcmp.lt.s32.totalorder %v162, 4
    %v185 = vsel %vm181, %v165, %v168
    %v186 = vsel %vm184, %v174, 2102212464
    %v187 = vsel %vm183, %v171, %v186
    %v188 = vsel %vm182, %v185, %v187
    %v189 = vsel %vm181, %v168, %v171
    %v190 = vsel %vm184, %v177, 920167782
    %v191 = vsel %vm183, %v174, %v190
    %v192 = vsel %vm182, %v189, %v191
    %v193 = vsel %vm181, %v171, %v174
    %v194 = vsel %vm184, %v180, 1326507024
    %v195 = vsel %vm183, %v177, %v194
    %v196 = vsel %vm182, %v193, %v195
    %v197 = vshll.u32 %v157, 8
    %v198 = vmul.u32.u64.compose %v197, %v196
    %v199 = vextract.low.u32 %v198
    %v200 = vextract.high.u32 %v198
    %v201 = vmul.u32.u64.compose %v197, %v192
    %v202 = vextract.low.u32 %v201
    %v203 = vextract.high.u32 %v201
    %v204 = vmul.u32 %v197, %v188
    %v205 = vadd.s32 %v200, %v202
    %vm206 = vc.u32 %v200, %v202
    %v207 = vadd.s32 %v203, 1
    %v208 = vsel %vm206, %v207, %v203
    %v209 = vadd.s32 %v204, %v208
    %v210 = vadd.s32 %v209, 536870912
    %v211 = vshrl.u32 %v210, 30
    %v212 = vshll.u32 %v211, 30
    %v213 = vsub.s32 %v209, %v212
    %vm214 = vcmp.lt.s32.totalorder %v213, 0
    %v215 = vsub.s32 0, %v213
    %v216 = vsel %vm214, %v215, %v213
    %v217 = vclz %v216
    %v218 = vsub.s32 %v217, 2
    %vm219 = vcmp.gt.s32.totalorder 0, %v218
    %v220 = vsel %vm219, 0, %v218
    %v221 = vsub.s32 32, %v220
    %v222 = vshll.u32 %v213, %v220
    %v223 = vshrl.u32 %v205, %v221
    %v224 = vor.u32 %v222, %v223
    %v225 = vsub.s32 4294967266, %v220
    %v226 = vadd.s32 %v225, 127
    %v227 = vshll.u32 %v226, 23
    %v228 = vor.u32 4788187, %v227
    %v229 = vand.u32 2147483647, %v228
    %v231 = vcvt.s32.f32 %v224
    %v232 = vmul.f32 %v231, %v229
    %v233 = vxor.u32 %v232, 2147483648
    %v234 = vsel %vm151, %v233, %v232
    %v235 = vsub.s32 4, %v211
    %v236 = vsel %vm151, %v235, %v211
    %v237 = vsel %vm150, %v41, %v234
    %v238 = vsel %vm150, 0, %v236
    %v239 = vcosq.f32.pop %v237
    %v240 = vsinq.f32.pop %v237
    %vm241 = vweird.f32 %v41
    %v242 = vadd.s32 %v238, 3
    %v243 = vand.u32 %v242, 3
    %vm244 = vcmp.lt.s32.totalorder %v243, 2
    %vm245 = vcmp.eq.s32.totalorder %v243, 0
    %v246 = vxor.u32 %v240, 2147483648
    %v247 = vsel %vm245, %v239, %v246
    %vm248 = vcmp.eq.s32.totalorder %v243, 2
    %v249 = vxor.u32 %v239, 2147483648
    %v250 = vsel %vm248, %v249, %v240
    %v251 = vsel %vm244, %v247, %v250
    %v252 = vsel %vm241, nan, %v251
    %v253 = vand.u32 2147483647, %v43
    %vm254 = vcmp.le.f32.partialorder %v253, 0.7853982
    %vm255 = vcmp.lt.s32.totalorder %v43, 0
    %v256 = vand.u32 %v43, 2139095040
    %v257 = vshrl.u32 %v256, 23
    %v258 = vsub.s32 %v257, 127
    %v259 = vand.u32 2147483647, %v43
    %v260 = vand.u32 %v259, 8388607
    %v261 = vor.u32 %v260, 8388608
    %v262 = vsub.s32 0, %v261
    %v263 = vadd.s32 %v258, 1
    %vm264 = vcmp.gt.s32.totalorder %v263, 0
    %v265 = vsel %vm264, %v263, 0
    %v266 = vshrl.u32 %v265, 5
    %v267 = vand.u32 %v265, 31
    %v268 = vsub.s32 32, %v267
    %v269 = vshrl.u32 683565275, %v268
    %v270 = vshll.u32 683565275, %v267
    %v271 = vshrl.u32 2475754826, %v268
    %v272 = vor.u32 %v270, %v271
    %v273 = vshll.u32 2475754826, %v267
    %v274 = vshrl.u32 2131351028, %v268
    %v275 = vor.u32 %v273, %v274
    %v276 = vshll.u32 2131351028, %v267
    %v277 = vshrl.u32 2102212464, %v268
    %v278 = vor.u32 %v276, %v277
    %v279 = vshll.u32 2102212464, %v267
    %v280 = vshrl.u32 920167782, %v268
    %v281 = vor.u32 %v279, %v280
    %v282 = vshll.u32 920167782, %v267
    %v283 = vshrl.u32 1326507024, %v268
    %v284 = vor.u32 %v282, %v283
    %vm285 = vcmp.lt.s32.totalorder %v266, 1
    %vm286 = vcmp.lt.s32.totalorder %v266, 2
    %vm287 = vcmp.lt.s32.totalorder %v266, 3
    %vm288 = vcmp.lt.s32.totalorder %v266, 4
    %v289 = vsel %vm285, %v269, %v272
    %v290 = vsel %vm288, %v278, 2102212464
    %v291 = vsel %vm287, %v275, %v290
    %v292 = vsel %vm286, %v289, %v291
    %v293 = vsel %vm285, %v272, %v275
    %v294 = vsel %vm288, %v281, 920167782
    %v295 = vsel %vm287, %v278, %v294
    %v296 = vsel %vm286, %v293, %v295
    %v297 = vsel %vm285, %v275, %v278
    %v298 = vsel %vm288, %v284, 1326507024
    %v299 = vsel %vm287, %v281, %v298
    %v300 = vsel %vm286, %v297, %v299
    %v301 = vshll.u32 %v261, 8
    %v302 = vmul.u32.u64.compose %v301, %v300
    %v303 = vextract.low.u32 %v302
    %v304 = vextract.high.u32 %v302
    %v305 = vmul.u32.u64.compose %v301, %v296
    %v306 = vextract.low.u32 %v305
    %v307 = vextract.high.u32 %v305
    %v308 = vmul.u32 %v301, %v292
    %v309 = vadd.s32 %v304, %v306
    %vm310 = vc.u32 %v304, %v306
    %v311 = vadd.s32 %v307, 1
    %v312 = vsel %vm310, %v311, %v307
    %v313 = vadd.s32 %v308, %v312
    %v314 = vadd.s32 %v313, 536870912
    %v315 = vshrl.u32 %v314, 30
    %v316 = vshll.u32 %v315, 30
    %v317 = vsub.s32 %v313, %v316
    %vm318 = vcmp.lt.s32.totalorder %v317, 0
    %v319 = vsub.s32 0, %v317
    %v320 = vsel %vm318, %v319, %v317
    %v321 = vclz %v320
    %v322 = vsub.s32 %v321, 2
    %vm323 = vcmp.gt.s32.totalorder 0, %v322
    %v324 = vsel %vm323, 0, %v322
    %v325 = vsub.s32 32, %v324
    %v326 = vshll.u32 %v317, %v324
    %v327 = vshrl.u32 %v309, %v325
    %v328 = vor.u32 %v326, %v327
    %v329 = vsub.s32 4294967266, %v324
    %v330 = vadd.s32 %v329, 127
    %v331 = vshll.u32 %v330, 23
    %v332 = vor.u32 4788187, %v331
    %v333 = vand.u32 2147483647, %v332
    %v335 = vcvt.s32.f32 %v328
    %v336 = vmul.f32 %v335, %v333
    %v337 = vxor.u32 %v336, 2147483648
    %v338 = vsel %vm255, %v337, %v336
    %v339 = vsub.s32 4, %v315
    %v340 = vsel %vm255, %v339, %v315
    %v341 = vsel %vm254, %v43, %v338
    %v342 = vsel %vm254, 0, %v340
    %v343 = vcosq.f32.pop %v341
    %v344 = vsinq.f32.pop %v341
    %vm345 = vweird.f32 %v43
    %v346 = vand.u32 %v342, 3
    %vm347 = vcmp.lt.s32.totalorder %v346, 2
    %vm348 = vcmp.eq.s32.totalorder %v346, 0
    %v349 = vxor.u32 %v344, 2147483648
    %v350 = vsel %vm348, %v343, %v349
    %vm351 = vcmp.eq.s32.totalorder %v346, 2
    %v352 = vxor.u32 %v343, 2147483648
    %v353 = vsel %vm351, %v352, %v344
    %v354 = vsel %vm347, %v350, %v353
    %v355 = vsel %vm345, nan, %v354
    %v356 = vand.u32 2147483647, %v43
    %vm357 = vcmp.le.f32.partialorder %v356, 0.7853982
    %vm358 = vcmp.lt.s32.totalorder %v43, 0
    %v359 = vand.u32 %v43, 2139095040
    %v360 = vshrl.u32 %v359, 23
    %v361 = vsub.s32 %v360, 127
    %v362 = vand.u32 2147483647, %v43
    %v363 = vand.u32 %v362, 8388607
    %v364 = vor.u32 %v363, 8388608
    %v365 = vsub.s32 0, %v364
    %v366 = vadd.s32 %v361, 1
    %vm367 = vcmp.gt.s32.totalorder %v366, 0
    %v368 = vsel %vm367, %v366, 0
    %v369 = vshrl.u32 %v368, 5
    %v370 = vand.u32 %v368, 31
    %v371 = vsub.s32 32, %v370
    %v372 = vshrl.u32 683565275, %v371
    %v373 = vshll.u32 683565275, %v370
    %v374 = vshrl.u32 2475754826, %v371
    %v375 = vor.u32 %v373, %v374
    %v376 = vshll.u32 2475754826, %v370
    %v377 = vshrl.u32 2131351028, %v371
    %v378 = vor.u32 %v376, %v377
    %v379 = vshll.u32 2131351028, %v370
    %v380 = vshrl.u32 2102212464, %v371
    %v381 = vor.u32 %v379, %v380
    %v382 = vshll.u32 2102212464, %v370
    %v383 = vshrl.u32 920167782, %v371
    %v384 = vor.u32 %v382, %v383
    %v385 = vshll.u32 920167782, %v370
    %v386 = vshrl.u32 1326507024, %v371
    %v387 = vor.u32 %v385, %v386
    %vm388 = vcmp.lt.s32.totalorder %v369, 1
    %vm389 = vcmp.lt.s32.totalorder %v369, 2
    %vm390 = vcmp.lt.s32.totalorder %v369, 3
    %vm391 = vcmp.lt.s32.totalorder %v369, 4
    %v392 = vsel %vm388, %v372, %v375
    %v393 = vsel %vm391, %v381, 2102212464
    %v394 = vsel %vm390, %v378, %v393
    %v395 = vsel %vm389, %v392, %v394
    %v396 = vsel %vm388, %v375, %v378
    %v397 = vsel %vm391, %v384, 920167782
    %v398 = vsel %vm390, %v381, %v397
    %v399 = vsel %vm389, %v396, %v398
    %v400 = vsel %vm388, %v378, %v381
    %v401 = vsel %vm391, %v387, 1326507024
    %v402 = vsel %vm390, %v384, %v401
    %v403 = vsel %vm389, %v400, %v402
    %v404 = vshll.u32 %v364, 8
    %v405 = vmul.u32.u64.compose %v404, %v403
    %v406 = vextract.low.u32 %v405
    %v407 = vextract.high.u32 %v405
    %v408 = vmul.u32.u64.compose %v404, %v399
    %v409 = vextract.low.u32 %v408
    %v410 = vextract.high.u32 %v408
    %v411 = vmul.u32 %v404, %v395
    %v412 = vadd.s32 %v407, %v409
    %vm413 = vc.u32 %v407, %v409
    %v414 = vadd.s32 %v410, 1
    %v415 = vsel %vm413, %v414, %v410
    %v416 = vadd.s32 %v411, %v415
    %v417 = vadd.s32 %v416, 536870912
    %v418 = vshrl.u32 %v417, 30
    %v419 = vshll.u32 %v418, 30
    %v420 = vsub.s32 %v416, %v419
    %vm421 = vcmp.lt.s32.totalorder %v420, 0
    %v422 = vsub.s32 0, %v420
    %v423 = vsel %vm421, %v422, %v420
    %v424 = vclz %v423
    %v425 = vsub.s32 %v424, 2
    %vm426 = vcmp.gt.s32.totalorder 0, %v425
    %v427 = vsel %vm426, 0, %v425
    %v428 = vsub.s32 32, %v427
    %v429 = vshll.u32 %v420, %v427
    %v430 = vshrl.u32 %v412, %v428
    %v431 = vor.u32 %v429, %v430
    %v432 = vsub.s32 4294967266, %v427
    %v433 = vadd.s32 %v432, 127
    %v434 = vshll.u32 %v433, 23
    %v435 = vor.u32 4788187, %v434
    %v436 = vand.u32 2147483647, %v435
    %v438 = vcvt.s32.f32 %v431
    %v439 = vmul.f32 %v438, %v436
    %v440 = vxor.u32 %v439, 2147483648
    %v441 = vsel %vm358, %v440, %v439
    %v442 = vsub.s32 4, %v418
    %v443 = vsel %vm358, %v442, %v418
    %v444 = vsel %vm357, %v43, %v441
    %v445 = vsel %vm357, 0, %v443
    %v446 = vcosq.f32.pop %v444
    %v447 = vsinq.f32.pop %v444
    %vm448 = vweird.f32 %v43
    %v449 = vadd.s32 %v445, 3
    %v450 = vand.u32 %v449, 3
    %vm451 = vcmp.lt.s32.totalorder %v450, 2
    %vm452 = vcmp.eq.s32.totalorder %v450, 0
    %v453 = vxor.u32 %v447, 2147483648
    %v454 = vsel %vm452, %v446, %v453
    %vm455 = vcmp.eq.s32.totalorder %v450, 2
    %v456 = vxor.u32 %v446, 2147483648
    %v457 = vsel %vm455, %v456, %v447
    %v458 = vsel %vm451, %v454, %v457
    %v459 = vsel %vm448, nan, %v458
    %v460 = vand.u32 2147483647, %v45
    %vm461 = vcmp.le.f32.partialorder %v460, 0.7853982
    %vm462 = vcmp.lt.s32.totalorder %v45, 0
    %v463 = vand.u32 %v45, 2139095040
    %v464 = vshrl.u32 %v463, 23
    %v465 = vsub.s32 %v464, 127
    %v466 = vand.u32 2147483647, %v45
    %v467 = vand.u32 %v466, 8388607
    %v468 = vor.u32 %v467, 8388608
    %v469 = vsub.s32 0, %v468
    %v470 = vadd.s32 %v465, 1
    %vm471 = vcmp.gt.s32.totalorder %v470, 0
    %v472 = vsel %vm471, %v470, 0
    %v473 = vshrl.u32 %v472, 5
    %v474 = vand.u32 %v472, 31
    %v475 = vsub.s32 32, %v474
    %v476 = vshrl.u32 683565275, %v475
    %v477 = vshll.u32 683565275, %v474
    %v478 = vshrl.u32 2475754826, %v475
    %v479 = vor.u32 %v477, %v478
    %v480 = vshll.u32 2475754826, %v474
    %v481 = vshrl.u32 2131351028, %v475
    %v482 = vor.u32 %v480, %v481
    %v483 = vshll.u32 2131351028, %v474
    %v484 = vshrl.u32 2102212464, %v475
    %v485 = vor.u32 %v483, %v484
    %v486 = vshll.u32 2102212464, %v474
    %v487 = vshrl.u32 920167782, %v475
    %v488 = vor.u32 %v486, %v487
    %v489 = vshll.u32 920167782, %v474
    %v490 = vshrl.u32 1326507024, %v475
    %v491 = vor.u32 %v489, %v490
    %vm492 = vcmp.lt.s32.totalorder %v473, 1
    %vm493 = vcmp.lt.s32.totalorder %v473, 2
    %vm494 = vcmp.lt.s32.totalorder %v473, 3
    %vm495 = vcmp.lt.s32.totalorder %v473, 4
    %v496 = vsel %vm492, %v476, %v479
    %v497 = vsel %vm495, %v485, 2102212464
    %v498 = vsel %vm494, %v482, %v497
    %v499 = vsel %vm493, %v496, %v498
    %v500 = vsel %vm492, %v479, %v482
    %v501 = vsel %vm495, %v488, 920167782
    %v502 = vsel %vm494, %v485, %v501
    %v503 = vsel %vm493, %v500, %v502
    %v504 = vsel %vm492, %v482, %v485
    %v505 = vsel %vm495, %v491, 1326507024
    %v506 = vsel %vm494, %v488, %v505
    %v507 = vsel %vm493, %v504, %v506
    %v508 = vshll.u32 %v468, 8
    %v509 = vmul.u32.u64.compose %v508, %v507
    %v510 = vextract.low.u32 %v509
    %v511 = vextract.high.u32 %v509
    %v512 = vmul.u32.u64.compose %v508, %v503
    %v513 = vextract.low.u32 %v512
    %v514 = vextract.high.u32 %v512
    %v515 = vmul.u32 %v508, %v499
    %v516 = vadd.s32 %v511, %v513
    %vm517 = vc.u32 %v511, %v513
    %v518 = vadd.s32 %v514, 1
    %v519 = vsel %vm517, %v518, %v514
    %v520 = vadd.s32 %v515, %v519
    %v521 = vadd.s32 %v520, 536870912
    %v522 = vshrl.u32 %v521, 30
    %v523 = vshll.u32 %v522, 30
    %v524 = vsub.s32 %v520, %v523
    %vm525 = vcmp.lt.s32.totalorder %v524, 0
    %v526 = vsub.s32 0, %v524
    %v527 = vsel %vm525, %v526, %v524
    %v528 = vclz %v527
    %v529 = vsub.s32 %v528, 2
    %vm530 = vcmp.gt.s32.totalorder 0, %v529
    %v531 = vsel %vm530, 0, %v529
    %v532 = vsub.s32 32, %v531
    %v533 = vshll.u32 %v524, %v531
    %v534 = vshrl.u32 %v516, %v532
    %v535 = vor.u32 %v533, %v534
    %v536 = vsub.s32 4294967266, %v531
    %v537 = vadd.s32 %v536, 127
    %v538 = vshll.u32 %v537, 23
    %v539 = vor.u32 4788187, %v538
    %v540 = vand.u32 2147483647, %v539
    %v542 = vcvt.s32.f32 %v535
    %v543 = vmul.f32 %v542, %v540
    %v544 = vxor.u32 %v543, 2147483648
    %v545 = vsel %vm462, %v544, %v543
    %v546 = vsub.s32 4, %v522
    %v547 = vsel %vm462, %v546, %v522
    %v548 = vsel %vm461, %v45, %v545
    %v549 = vsel %vm461, 0, %v547
    %v550 = vcosq.f32.pop %v548
    %v551 = vsinq.f32.pop %v548
    %vm552 = vweird.f32 %v45
    %v553 = vand.u32 %v549, 3
    %vm554 = vcmp.lt.s32.totalorder %v553, 2
    %vm555 = vcmp.eq.s32.totalorder %v553, 0
    %v556 = vxor.u32 %v551, 2147483648
    %v557 = vsel %vm555, %v550, %v556
    %vm558 = vcmp.eq.s32.totalorder %v553, 2
    %v559 = vxor.u32 %v550, 2147483648
    %v560 = vsel %vm558, %v559, %v551
    %v561 = vsel %vm554, %v557, %v560
    %v562 = vsel %vm552, nan, %v561
    %v563 = vand.u32 2147483647, %v45
    %vm564 = vcmp.le.f32.partialorder %v563, 0.7853982
    %vm565 = vcmp.lt.s32.totalorder %v45, 0
    %v566 = vand.u32 %v45, 2139095040
    %v567 = vshrl.u32 %v566, 23
    %v568 = vsub.s32 %v567, 127
    %v569 = vand.u32 2147483647, %v45
    %v570 = vand.u32 %v569, 8388607
    %v571 = vor.u32 %v570, 8388608
    %v572 = vsub.s32 0, %v571
    %v573 = vadd.s32 %v568, 1
    %vm574 = vcmp.gt.s32.totalorder %v573, 0
    %v575 = vsel %vm574, %v573, 0
    %v576 = vshrl.u32 %v575, 5
    %v577 = vand.u32 %v575, 31
    %v578 = vsub.s32 32, %v577
    %v579 = vshrl.u32 683565275, %v578
    %v580 = vshll.u32 683565275, %v577
    %v581 = vshrl.u32 2475754826, %v578
    %v582 = vor.u32 %v580, %v581
    %v583 = vshll.u32 2475754826, %v577
    %v584 = vshrl.u32 2131351028, %v578
    %v585 = vor.u32 %v583, %v584
    %v586 = vshll.u32 2131351028, %v577
    %v587 = vshrl.u32 2102212464, %v578
    %v588 = vor.u32 %v586, %v587
    %v589 = vshll.u32 2102212464, %v577
    %v590 = vshrl.u32 920167782, %v578
    %v591 = vor.u32 %v589, %v590
    %v592 = vshll.u32 920167782, %v577
    %v593 = vshrl.u32 1326507024, %v578
    %v594 = vor.u32 %v592, %v593
    %vm595 = vcmp.lt.s32.totalorder %v576, 1
    %vm596 = vcmp.lt.s32.totalorder %v576, 2
    %vm597 = vcmp.lt.s32.totalorder %v576, 3
    %vm598 = vcmp.lt.s32.totalorder %v576, 4
    %v599 = vsel %vm595, %v579, %v582
    %v600 = vsel %vm598, %v588, 2102212464
    %v601 = vsel %vm597, %v585, %v600
    %v602 = vsel %vm596, %v599, %v601
    %v603 = vsel %vm595, %v582, %v585
    %v604 = vsel %vm598, %v591, 920167782
    %v605 = vsel %vm597, %v588, %v604
    %v606 = vsel %vm596, %v603, %v605
    %v607 = vsel %vm595, %v585, %v588
    %v608 = vsel %vm598, %v594, 1326507024
    %v609 = vsel %vm597, %v591, %v608
    %v610 = vsel %vm596, %v607, %v609
    %v611 = vshll.u32 %v571, 8
    %v612 = vmul.u32.u64.compose %v611, %v610
    %v613 = vextract.low.u32 %v612
    %v614 = vextract.high.u32 %v612
    %v615 = vmul.u32.u64.compose %v611, %v606
    %v616 = vextract.low.u32 %v615
    %v617 = vextract.high.u32 %v615
    %v618 = vmul.u32 %v611, %v602
    %v619 = vadd.s32 %v614, %v616
    %vm620 = vc.u32 %v614, %v616
    %v621 = vadd.s32 %v617, 1
    %v622 = vsel %vm620, %v621, %v617
    %v623 = vadd.s32 %v618, %v622
    %v624 = vadd.s32 %v623, 536870912
    %v625 = vshrl.u32 %v624, 30
    %v626 = vshll.u32 %v625, 30
    %v627 = vsub.s32 %v623, %v626
    %vm628 = vcmp.lt.s32.totalorder %v627, 0
    %v629 = vsub.s32 0, %v627
    %v630 = vsel %vm628, %v629, %v627
    %v631 = vclz %v630
    %v632 = vsub.s32 %v631, 2
    %vm633 = vcmp.gt.s32.totalorder 0, %v632
    %v634 = vsel %vm633, 0, %v632
    %v635 = vsub.s32 32, %v634
    %v636 = vshll.u32 %v627, %v634
    %v637 = vshrl.u32 %v619, %v635
    %v638 = vor.u32 %v636, %v637
    %v639 = vsub.s32 4294967266, %v634
    %v640 = vadd.s32 %v639, 127
    %v641 = vshll.u32 %v640, 23
    %v642 = vor.u32 4788187, %v641
    %v643 = vand.u32 2147483647, %v642
    %v645 = vcvt.s32.f32 %v638
    %v646 = vmul.f32 %v645, %v643
    %v647 = vxor.u32 %v646, 2147483648
    %v648 = vsel %vm565, %v647, %v646
    %v649 = vsub.s32 4, %v625
    %v650 = vsel %vm565, %v649, %v625
    %v651 = vsel %vm564, %v45, %v648
    %v652 = vsel %vm564, 0, %v650
    %v653 = vcosq.f32.pop %v651
    %v654 = vsinq.f32.pop %v651
    %vm655 = vweird.f32 %v45
    %v656 = vadd.s32 %v652, 3
    %v657 = vand.u32 %v656, 3
    %vm658 = vcmp.lt.s32.totalorder %v657, 2
    %vm659 = vcmp.eq.s32.totalorder %v657, 0
    %v660 = vxor.u32 %v654, 2147483648
    %v661 = vsel %vm659, %v653, %v660
    %vm662 = vcmp.eq.s32.totalorder %v657, 2
    %v663 = vxor.u32 %v653, 2147483648
    %v664 = vsel %vm662, %v663, %v654
    %v665 = vsel %vm658, %v661, %v664
    %v666 = vsel %vm655, nan, %v665
    %v667 = vrcp.pop %v355
    %v668 = vmul.f32 1.0, %v667
    %v669 = vmul.f32 %v459, %v668
    %v670 = vld [vmem:[#allocation5] sm:$0x1]
    %v671 = vmul.f32 %v252, %v666
    %v672 = vmul.f32 %v562, %v148
    %v673 = vmul.f32 %v672, %v459
    %v674 = vadd.f32 %v671, %v673
    %v675 = vsub.f32 0.0, %v674
    %v676 = vmul.f32 %v675, %v670
    %v677 = vmul.f32 %v562, %v252
    %v678 = vmul.f32 %v148, %v666
    %v679 = vmul.f32 %v678, %v459
    %v680 = vsub.f32 %v677, %v679
    %v681 = vsub.f32 0.0, %v680
    %v682 = vmul.f32 %v681, %v670
    %v683 = vmul.f32 %v148, %v355
    %v684 = vmul.f32 %v683, %v670
    %v685 = vsub.f32 -9.81, %v684
    %s686 = scalar_lea.vmem [#allocation2], 6
    %v687 = vld [vmem:[%s686] sm:$0x1]
    %v688 = vmul.f32 %v676, 0.05
    %v689 = vadd.f32 %v687, %v688
    %s690 = scalar_lea.vmem [#allocation2], 7
    %v691 = vld [vmem:[%s690] sm:$0x1]
    %v692 = vmul.f32 %v682, 0.05
    %v693 = vadd.f32 %v691, %v692
    %s694 = scalar_lea.vmem [#allocation2], 8
    %v695 = vld [vmem:[%s694] sm:$0x1]
    %v696 = vmul.f32 %v685, 0.05
    %v697 = vadd.f32 %v695, %v696
    %v698 = vld [vmem:[#allocation2] sm:$0x1]
    %v699 = vmul.f32 %v689, 0.05
    %v700 = vadd.f32 %v698, %v699
    %701 = vst [vmem:[#allocation7] sm:$0x1] %v700
    %s702 = scalar_lea.vmem [#allocation2], 1
    %v703 = vld [vmem:[%s702] sm:$0x1]
    %v704 = vadd.f32 %v703, %v693
    %v705 = vadd.f32 %v704, 0.05
    %s706 = scalar_lea.vmem [#allocation7], 1
    %707 = vst [vmem:[%s706] sm:$0x1] %v705
    %s708 = scalar_lea.vmem [#allocation2], 2
    %v709 = vld [vmem:[%s708] sm:$0x1]
    %v710 = vadd.f32 %v709, %v697
    %v711 = vadd.f32 %v710, 0.05
    %s712 = scalar_lea.vmem [#allocation7], 2
    %713 = vst [vmem:[%s712] sm:$0x1] %v711
    %v714 = vmax.f32 %v689, -1000.0
    %v715 = vmin.f32 %v714, 1000.0
    %s716 = scalar_lea.vmem [#allocation7], 6
    %717 = vst [vmem:[%s716] sm:$0x1] %v715
    %v718 = vmax.f32 %v693, -1000.0
    %v719 = vmin.f32 %v718, 1000.0
    %s720 = scalar_lea.vmem [#allocation7], 7
    %721 = vst [vmem:[%s720] sm:$0x1] %v719
    %v722 = vmax.f32 %v697, -1000.0
    %v723 = vmin.f32 %v722, 1000.0
    %s724 = scalar_lea.vmem [#allocation7], 8
    %725 = vst [vmem:[%s724] sm:$0x1] %v723
    %s726 = scalar_lea.vmem [#allocation2], 9
    %v727 = vld [vmem:[%s726] sm:$0x1]
    %s728 = scalar_lea.vmem [#allocation2], 10
    %v729 = vld [vmem:[%s728] sm:$0x1]
    %s730 = scalar_lea.vmem [#allocation2], 11
    %v731 = vld [vmem:[%s730] sm:$0x1]
    %v732 = vmul.f32 %v729, -0.2
    %v733 = vmul.f32 %v732, %v731
    %s734 = scalar_lea.vmem [#allocation5], 1
    %v735 = vld [vmem:[%s734] sm:$0x1]
    %v736 = vadd.f32 %v733, %v735
    %v737 = vmul.f32 %v736, 2.0
    %v738 = vmul.f32 %v727, -0.2
    %v739 = vmul.f32 %v738, %v731
    %s740 = scalar_lea.vmem [#allocation5], 2
    %v741 = vld [vmem:[%s740] sm:$0x1]
    %v742 = vadd.f32 %v739, %v741
    %v743 = vmul.f32 %v742, 10.0
    %v744 = vmul.f32 %v727, 0.4
    %v745 = vmul.f32 %v744, %v729
    %s746 = scalar_lea.vmem [#allocation5], 3
    %v747 = vld [vmem:[%s746] sm:$0x1]
    %v748 = vadd.f32 %v745, %v747
    %v749 = vmul.f32 %v748, 3.3333333
    %v750 = vmul.f32 %v737, 0.05
    %v751 = vadd.f32 %v727, %v750
    %v752 = vmul.f32 %v743, 0.05
    %v753 = vadd.f32 %v729, %v752
    %v754 = vmul.f32 %v749, 0.05
    %v755 = vadd.f32 %v731, %v754
    %v756 = vmul.f32 %v753, %v252
    %v757 = vmul.f32 %v755, %v148
    %v758 = vadd.f32 %v756, %v757
    %v759 = vmul.f32 %v758, %v668
    %v760 = vmul.f32 %v753, %v148
    %v761 = vmul.f32 %v755, %v252
    %v762 = vsub.f32 %v760, %v761
    %v763 = vmul.f32 %v758, %v669
    %v764 = vadd.f32 %v751, %v763
    %v765 = vmul.f32 %v764, 0.05
    %v766 = vadd.f32 %v41, %v765
    %v767 = vmax.f32 %v766, -1.2566371
    %v768 = vmin.f32 %v767, 1.2566371
    %s769 = scalar_lea.vmem [#allocation7], 3
    %770 = vst [vmem:[%s769] sm:$0x1] %v768
    %v771 = vmul.f32 %v762, 0.05
    %v772 = vadd.f32 %v43, %v771
    %v773 = vmax.f32 %v772, -1.2566371
    %v774 = vmin.f32 %v773, 1.2566371
    %s775 = scalar_lea.vmem [#allocation7], 4
    %776 = vst [vmem:[%s775] sm:$0x1] %v774
    %v777 = vmul.f32 %v759, 0.05
    %v778 = vadd.f32 %v45, %v777
    %s779 = scalar_lea.vmem [#allocation7], 5
    %780 = vst [vmem:[%s779] sm:$0x1] %v778
    %v781 = vmax.f32 %v751, -1000.0
    %v782 = vmin.f32 %v781, 1000.0
    %s783 = scalar_lea.vmem [#allocation7], 9
    %784 = vst [vmem:[%s783] sm:$0x1] %v782
    %v785 = vmax.f32 %v753, -1000.0
    %v786 = vmin.f32 %v785, 1000.0
    %s787 = scalar_lea.vmem [#allocation7], 10
    %788 = vst [vmem:[%s787] sm:$0x1] %v786
    %v789 = vmax.f32 %v755, -1000.0
    %v790 = vmin.f32 %v789, 1000.0
    %s791 = scalar_lea.vmem [#allocation7], 11
    %792 = vst [vmem:[%s791] sm:$0x1] %v790
    // Predicated region
    $region18: #{tpu_custom_call.1} parent=1 // pred_check
      _
    $region19: #{tpu_custom_call.1} parent=1 // pred_check_branch
      %794 = sbr.rel (0) target = $region21
    $region20: #{tpu_custom_call.1} parent=1 // pred_region
      %s796 = ssub.s32 192, 192
      %797 = vsyncadd [#allocation4], %s796
      %s798 = sshll.u32 [#allocation7], 4
      %s799 = int_to_ptr.vmem [resolvable:$true] %s798
      %804 = dma.vmem_to_hbm [thread:$0]  %s799, 192, %s2, [#allocation4], 16, 16, 1
    $region21: #{tpu_custom_call.1} parent=1 // pred_fallthru
      _
    // Predicated region
    $region22: #{tpu_custom_call.1} parent=1 // pred_check
      _
    $region23: #{tpu_custom_call.1} parent=1 // pred_check_branch
      %806 = sbr.rel (0) target = $region25
    $region24: #{tpu_custom_call.1} parent=1 // pred_region
      %807 = dma.done [#allocation4], 192
    $region25: #{tpu_custom_call.1} parent=1 // pred_fallthru
      _
    %808 = vsyncpa [#allocation3], 1
    %809 = vsyncpa [#allocation6], 1
    %810 = vsyncpa [#allocation4], 1

</llo_original>
